<compile_context>
chip_gen: v6e
topology: v6e:2x2x1
jax: 0.10.0
libtpu: 0.0.40
codegen_flags: <defaults>
</compile_context>

<pallas_src>
import jax
import jax.numpy as jnp
from jax.experimental import pallas as pl
from jax.experimental.pallas import tpu as pltpu


# ---------------------------------------------------------------------------
# Kernels
# ---------------------------------------------------------------------------
def _lstm_cell_kernel(xh_ref, cx_ref, w_ref, b_ref, hc_ref):
    """One LSTM cell step on a [TB, C+H] tile of the concatenated [x | hx]."""
    H = cx_ref.shape[1]

    # gates = [x|hx] @ W_cat + (b_ih + b_hh)   -> [TB, 4H], lane-dense
    gates = jnp.dot(xh_ref[...].astype(jnp.float32),
                    w_ref[...].astype(jnp.float32),
                    preferred_element_type=jnp.float32) + b_ref[...]

    # Two full-width EUP passes, then lane-slice (4H == 128 lanes for H == 32).
    sig = jax.nn.sigmoid(gates)
    tnh = jnp.tanh(gates)
    ingate     = sig[:, 0 * H:1 * H]
    forgetgate = sig[:, 1 * H:2 * H]
    cellgate   = tnh[:, 2 * H:3 * H]
    outgate    = sig[:, 3 * H:4 * H]

    cx = cx_ref[...].astype(jnp.float32)
    cy = forgetgate * cx + ingate * cellgate
    hy = outgate * jnp.tanh(cy)

    # Single lane-packed [TB, 2H] writeback: [hy | cy].
    hc_ref[...] = jnp.concatenate([hy, cy], axis=1).astype(hc_ref.dtype)


def _lstm_seq_kernel(x_ref, h0_ref, c0_ref, w_ref, b_ref,
                     hseq_ref, hcfin_ref, h_sc, c_sc):
    """T timesteps fused in one kernel; grid axis 0 is time ("arbitrary").

    Weights/bias stay VMEM-resident (block index fixed at (0, 0)); the running
    h/c state lives in VMEM scratch, so only the per-step x tile streams in and
    the per-step hy tile streams out.
    """
    t = pl.program_id(0)
    H = h_sc.shape[1]

    @pl.when(t == 0)
    def _init():
        h_sc[...] = h0_ref[...].astype(jnp.float32)
        c_sc[...] = c0_ref[...].astype(jnp.float32)

    xh = jnp.concatenate([x_ref[...].astype(jnp.float32), h_sc[...]], axis=1)
    gates = jnp.dot(xh, w_ref[...].astype(jnp.float32),
                    preferred_element_type=jnp.float32) + b_ref[...]

    sig = jax.nn.sigmoid(gates)
    tnh = jnp.tanh(gates)
    ingate     = sig[:, 0 * H:1 * H]
    forgetgate = sig[:, 1 * H:2 * H]
    cellgate   = tnh[:, 2 * H:3 * H]
    outgate    = sig[:, 3 * H:4 * H]

    cy = forgetgate * c_sc[...] + ingate * cellgate
    hy = outgate * jnp.tanh(cy)

    h_sc[...] = hy
    c_sc[...] = cy
    hseq_ref[...] = hy.astype(hseq_ref.dtype)

    @pl.when(t == pl.num_programs(0) - 1)
    def _finalize():
        hcfin_ref[...] = jnp.concatenate([hy, cy], axis=1).astype(hcfin_ref.dtype)


# ---------------------------------------------------------------------------
# Wrappers
# ---------------------------------------------------------------------------
def prepare_tn_lstm_params(w_ih, b_ih, w_hh, b_hh, param_dtype=None):
    """One-time parameter prep (call once, NOT per step).

    w_ih: [4H, C] (dense stand-in for tn_block), b_ih: [4H]
    w_hh: [4H, H], b_hh: [4H]

    Returns (w_cat [C+H, 4H], bias [1, 4H]): stacked + transposed weight and
    pre-summed bias, ready for a single lane-dense MXU matmul.  On v6e/v7x
    pass param_dtype=jnp.bfloat16 to halve weight DMA bytes (the kernel still
    accumulates in f32).
    """
    w_cat = jnp.concatenate([w_ih, w_hh], axis=1).T          # [C+H, 4H]
    bias = (b_ih + b_hh).reshape(1, -1).astype(jnp.float32)  # [1, 4H]
    if param_dtype is not None:
        w_cat = w_cat.astype(param_dtype)
    return w_cat, bias


def tn_lstm_cell(x, state, w_cat, bias, *, block_b=None):
    """Pallas implementation of _TNLSTMCell.forward (eval mode).

    x: [B, C]; state = (hx [B, H], cx [B, H]).
    Returns (hy, (hy, cy)) exactly like the PyTorch module.
    """
    hx, cx = state
    B, C = x.shape
    H = hx.shape[1]
    K = C + H
    G = 4 * H

    # Fuse the two gate matmuls into one: single [B, C+H] activation slab.
    xh = jnp.concatenate([x, hx], axis=1)

    if block_b is None:
        block_b = B if B <= 128 else 128
    if B % block_b != 0 or (block_b != B and block_b % 8 != 0):
        block_b = B                      # fall back to a single batch block
    grid = (B // block_b,)

    hc = pl.pallas_call(
        _lstm_cell_kernel,
        out_shape=jax.ShapeDtypeStruct((B, 2 * H), x.dtype),
        grid=grid,
        in_specs=[
            pl.BlockSpec((block_b, K), lambda i: (i, 0)),   # [x | hx] tile
            pl.BlockSpec((block_b, H), lambda i: (i, 0)),   # cx tile
            pl.BlockSpec((K, G),       lambda i: (0, 0)),   # W_cat (resident)
            pl.BlockSpec((1, G),       lambda i: (0, 0)),   # bias  (resident)
        ],
        out_specs=pl.BlockSpec((block_b, 2 * H), lambda i: (i, 0)),
        compiler_params=pltpu.CompilerParams(
            dimension_semantics=("parallel",)),             # batch blocks independent
    )(xh, cx, w_cat, bias)

    hy = hc[:, :H]
    cy = hc[:, H:]
    return hy, (hy, cy)


def tn_lstm_sequence(x_seq, state0, w_cat, bias):
    """Run the cell over x_seq [T, B, C] inside a single pallas_call.

    Returns (hy_seq [T, B, H], (hy_T, cy_T)).
    """
    h0, c0 = state0
    T, B, C = x_seq.shape
    H = h0.shape[1]
    K = C + H
    G = 4 * H

    hy_seq, hc_fin = pl.pallas_call(
        _lstm_seq_kernel,
        out_shape=(jax.ShapeDtypeStruct((T, B, H), x_seq.dtype),
                   jax.ShapeDtypeStruct((B, 2 * H), x_seq.dtype)),
        grid=(T,),
        in_specs=[
            pl.BlockSpec((None, B, C), lambda t: (t, 0, 0)),  # x_t streamed
            pl.BlockSpec((B, H),       lambda t: (0, 0)),     # h0 (read at t=0)
            pl.BlockSpec((B, H),       lambda t: (0, 0)),     # c0 (read at t=0)
            pl.BlockSpec((K, G),       lambda t: (0, 0)),     # W_cat resident
            pl.BlockSpec((1, G),       lambda t: (0, 0)),     # bias resident
        ],
        out_specs=(
            pl.BlockSpec((None, B, H), lambda t: (t, 0, 0)),  # hy per step
            pl.BlockSpec((B, 2 * H),   lambda t: (0, 0)),     # final [hy | cy]
        ),
        scratch_shapes=[pltpu.VMEM((B, H), jnp.float32),      # running h
                        pltpu.VMEM((B, H), jnp.float32)],     # running c
        compiler_params=pltpu.CompilerParams(
            dimension_semantics=("arbitrary",)),              # carried state
    )(x_seq, h0, c0, w_cat, bias)

    hy_T = hc_fin[:, :H]
    cy_T = hc_fin[:, H:]
    return hy_seq, (hy_T, cy_T)


# ---------------------------------------------------------------------------
# Reference + test
# ---------------------------------------------------------------------------
def _orthogonal(key, rows, cols, dtype=jnp.float32):
    # Equivalent of torch.nn.init.orthogonal_ for a [rows, cols] matrix.
    a = jax.random.normal(key, (rows, cols), dtype=jnp.float32)
    q, r = jnp.linalg.qr(a)
    q = q * jnp.sign(jnp.diagonal(r))[None, :]
    return q.astype(dtype)


def _reference_cell(x, hx, cx, w_ih, b_ih, w_hh, b_hh):
    gates = x @ w_ih.T + b_ih + hx @ w_hh.T + b_hh
    i, f, g, o = jnp.split(gates, 4, axis=1)
    i, f, g, o = jax.nn.sigmoid(i), jax.nn.sigmoid(f), jnp.tanh(g), jax.nn.sigmoid(o)
    cy = f * cx + i * g
    hy = o * jnp.tanh(cy)
    return hy, cy


if __name__ == "__main__":
    B, C, H = 8, 32, 32
    G = 4 * H
    T = 6

    key = jax.random.PRNGKey(0)
    kx, kh, kc, kwih, kbih, kwhh, kxs, kxl, khl, kcl = jax.random.split(key, 10)

    # tn_block stand-in: dense linear C -> 4H
    w_ih = jax.random.normal(kwih, (G, C), dtype=jnp.float32) * 0.1
    b_ih = jax.random.normal(kbih, (G,), dtype=jnp.float32) * 0.1
    # hidden-to-hidden: orthogonal init, zero bias (as in the module)
    w_hh = _orthogonal(kwhh, G, H)
    b_hh = jnp.zeros((G,), dtype=jnp.float32)

    # One-time parameter prep (keep f32 so the numeric check is tight; use
    # param_dtype=jnp.bfloat16 on v6e/v7x to halve weight DMA).
    w_cat, bias = prepare_tn_lstm_params(w_ih, b_ih, w_hh, b_hh)

    # ---- test 1: single cell step (module-faithful forward) ---------------
    x = jax.random.normal(kx, (B, C), dtype=jnp.float32)
    hx = jax.random.normal(kh, (B, H), dtype=jnp.float32)
    cx = jax.random.normal(kc, (B, H), dtype=jnp.float32)

    hy, (_, cy) = tn_lstm_cell(x, (hx, cx), w_cat, bias)
    jax.block_until_ready((hy, cy))
    hy_ref, cy_ref = _reference_cell(x, hx, cx, w_ih, b_ih, w_hh, b_hh)
    assert jnp.allclose(hy, hy_ref, atol=1e-4, rtol=1e-4), "hy mismatch"
    assert jnp.allclose(cy, cy_ref, atol=1e-4, rtol=1e-4), "cy mismatch"

    # ---- test 2: larger batch, batch-parallel grid (2 blocks) -------------
    BL = 256
    xl = jax.random.normal(kxl, (BL, C), dtype=jnp.float32)
    hl = jax.random.normal(khl, (BL, H), dtype=jnp.float32)
    cl = jax.random.normal(kcl, (BL, H), dtype=jnp.float32)
    hy_l, (_, cy_l) = tn_lstm_cell(xl, (hl, cl), w_cat, bias, block_b=128)
    jax.block_until_ready((hy_l, cy_l))
    hy_lr, cy_lr = _reference_cell(xl, hl, cl, w_ih, b_ih, w_hh, b_hh)
    assert jnp.allclose(hy_l, hy_lr, atol=1e-4, rtol=1e-4), "hy (batched) mismatch"
    assert jnp.allclose(cy_l, cy_lr, atol=1e-4, rtol=1e-4), "cy (batched) mismatch"

    # ---- test 3: fused sequence kernel vs. per-step reference -------------
    x_seq = jax.random.normal(kxs, (T, B, C), dtype=jnp.float32)
    hy_seq, (hy_T, cy_T) = tn_lstm_sequence(x_seq, (hx, cx), w_cat, bias)
    jax.block_until_ready((hy_seq, hy_T, cy_T))

    h_r, c_r = hx, cx
    hy_seq_ref = []
    for t in range(T):
        h_r, c_r = _reference_cell(x_seq[t], h_r, c_r, w_ih, b_ih, w_hh, b_hh)
        hy_seq_ref.append(h_r)
    hy_seq_ref = jnp.stack(hy_seq_ref, axis=0)
    assert jnp.allclose(hy_seq, hy_seq_ref, atol=1e-4, rtol=1e-4), "hy_seq mismatch"
    assert jnp.allclose(hy_T, h_r, atol=1e-4, rtol=1e-4), "final hy mismatch"
    assert jnp.allclose(cy_T, c_r, atol=1e-4, rtol=1e-4), "final cy mismatch"

    print("KERNEL_OK")
</pallas_src>

<mosaic_0001>
module attributes {stable_mosaic.version = 11 : i64} {
  func.func @_lstm_cell_kernel(%arg0: i32, %arg1: memref<8x64xf32, #tpu.memory_space<vmem>>, %arg2: memref<8x32xf32, #tpu.memory_space<vmem>>, %arg3: memref<64x128xf32, #tpu.memory_space<vmem>>, %arg4: memref<1x128xf32, #tpu.memory_space<vmem>>, %arg5: memref<8x64xf32, #tpu.memory_space<vmem>>) attributes {dimension_semantics = [#tpu.dimension_semantics<parallel>], iteration_bounds = array<i64: 1>, scalar_prefetch = 0 : i64, scratch_operands = 0 : i64, tpu.core_type = #tpu.core_type<tc>, window_params = [{transform_indices = @transform_0, window_bounds = array<i64: 8, 64>}, {transform_indices = @transform_1, window_bounds = array<i64: 8, 32>}, {pipeline_mode = #tpu.pipeline_mode<synchronous>, transform_indices = @transform_2, window_bounds = array<i64: 64, 128>}, {pipeline_mode = #tpu.pipeline_mode<synchronous>, transform_indices = @transform_3, window_bounds = array<i64: 1, 128>}, {transform_indices = @transform_4, window_bounds = array<i64: 8, 64>}]} {
    %c0 = arith.constant 0 : index
    %c0_0 = arith.constant 0 : index
    %0 = vector.load %arg1[%c0, %c0_0] : memref<8x64xf32, #tpu.memory_space<vmem>>, vector<8x64xf32>
    %c0_1 = arith.constant 0 : index
    %c0_2 = arith.constant 0 : index
    %1 = vector.load %arg3[%c0_1, %c0_2] : memref<64x128xf32, #tpu.memory_space<vmem>>, vector<64x128xf32>
    %cst = arith.constant dense<0.000000e+00> : vector<8x128xf32>
    %2 = tpu.matmul %0, %1, %cst {dimension_numbers = #tpu.dot_dimension_numbers<[1], [0], [0], [1], [0, 0, 1, 1], [], []>} : vector<8x64xf32>, vector<64x128xf32>, vector<8x128xf32> -> vector<8x128xf32>
    %c0_3 = arith.constant 0 : index
    %c0_4 = arith.constant 0 : index
    %3 = vector.load %arg4[%c0_3, %c0_4] : memref<1x128xf32, #tpu.memory_space<vmem>>, vector<1x128xf32>
    %4 = vector.broadcast %3 : vector<1x128xf32> to vector<8x128xf32>
    %5 = arith.addf %2, %4 : vector<8x128xf32>
    %6 = arith.negf %5 : vector<8x128xf32>
    %7 = math.exp %6 : vector<8x128xf32>
    %cst_5 = arith.constant 1.000000e+00 : f32
    %8 = vector.broadcast %cst_5 : f32 to vector<8x128xf32>
    %9 = arith.addf %8, %7 : vector<8x128xf32>
    %10 = arith.divf %8, %9 : vector<8x128xf32>
    %11 = math.tanh %5 : vector<8x128xf32>
    %12 = vector.extract_strided_slice %10 {offsets = [0, 0], sizes = [8, 32], strides = [1, 1]} : vector<8x128xf32> to vector<8x32xf32>
    %13 = vector.extract_strided_slice %10 {offsets = [0, 32], sizes = [8, 32], strides = [1, 1]} : vector<8x128xf32> to vector<8x32xf32>
    %14 = vector.extract_strided_slice %11 {offsets = [0, 64], sizes = [8, 32], strides = [1, 1]} : vector<8x128xf32> to vector<8x32xf32>
    %15 = vector.extract_strided_slice %10 {offsets = [0, 96], sizes = [8, 32], strides = [1, 1]} : vector<8x128xf32> to vector<8x32xf32>
    %c0_6 = arith.constant 0 : index
    %c0_7 = arith.constant 0 : index
    %16 = vector.load %arg2[%c0_6, %c0_7] : memref<8x32xf32, #tpu.memory_space<vmem>>, vector<8x32xf32>
    %17 = arith.mulf %13, %16 : vector<8x32xf32>
    %18 = arith.mulf %12, %14 : vector<8x32xf32>
    %19 = arith.addf %17, %18 : vector<8x32xf32>
    %20 = math.tanh %19 : vector<8x32xf32>
    %21 = arith.mulf %15, %20 : vector<8x32xf32>
    %22 = tpu.concatenate %21, %19 in 1 : vector<8x32xf32>, vector<8x32xf32> -> vector<8x64xf32>
    %c0_8 = arith.constant 0 : index
    %c0_9 = arith.constant 0 : index
    %23 = vector.load %arg5[%c0_8, %c0_9] : memref<8x64xf32, #tpu.memory_space<vmem>>, vector<8x64xf32>
    tpu.vector_store %arg5[%c0_8, %c0_9], %22 {strides = array<i32>} : memref<8x64xf32, #tpu.memory_space<vmem>>, vector<8x64xf32>,
    return
  }
  func.func @transform_0(%arg0: i32) -> (i32, i32) {
    %c0_i32 = arith.constant 0 : i32
    %c0_i32_0 = arith.constant 0 : i32
    return %arg0, %c0_i32 : i32, i32
  }
  func.func @transform_1(%arg0: i32) -> (i32, i32) {
    %c0_i32 = arith.constant 0 : i32
    %c0_i32_0 = arith.constant 0 : i32
    return %arg0, %c0_i32 : i32, i32
  }
  func.func @transform_2(%arg0: i32) -> (i32, i32) {
    %c0_i32 = arith.constant 0 : i32
    %c0_i32_0 = arith.constant 0 : i32
    %c0_i32_1 = arith.constant 0 : i32
    return %c0_i32, %c0_i32_0 : i32, i32
  }
  func.func @transform_3(%arg0: i32) -> (i32, i32) {
    %c0_i32 = arith.constant 0 : i32
    %c0_i32_0 = arith.constant 0 : i32
    %c0_i32_1 = arith.constant 0 : i32
    return %c0_i32, %c0_i32_0 : i32, i32
  }
  func.func @transform_4(%arg0: i32) -> (i32, i32) {
    %c0_i32 = arith.constant 0 : i32
    %c0_i32_0 = arith.constant 0 : i32
    return %arg0, %c0_i32 : i32, i32
  }
}

</mosaic_0001>

<llo_original>
// kernel: tpu_custom_call.1
$region0: #{tpu_custom_call.1}
  #allocation0 [shape = 'u32[]', space=smem, size = 0x4, offset = 0x4, fixed_abs, tag = 'smem constant byte address 0x4 - core index']
  #allocation1 [shape = 'u32[144,128]{1,0:T(1,128)}', space=vmem, size = 0x12000, scoped, tag = 'internal scratch']
  %s0 = inlined_call_operand.hbm [shape: f32[8,64], index: 0, kind: input, shape index: {}]
  %s1 = inlined_call_operand.hbm [shape: f32[8,32], index: 1, kind: input, shape index: {}]
  %s2 = inlined_call_operand.hbm [shape: f32[64,128], index: 2, kind: input, shape index: {}]
  %s3 = inlined_call_operand.vmem [shape: f32[1,128], index: 3, kind: input, shape index: {}]
  %s4 = inlined_call_operand.hbm [shape: f32[8,64], index: 4, kind: output, shape index: {}]
  %s5 = sld [smem:[#allocation0]]
  $region38: #{tpu_custom_call.1} parent=0
    _
  %s7 = ssub.s32 1, %s5
  %s8 = scalar_select 0, %s7, %s5
  $region1: #{tpu_custom_call.1} parent=0
    #allocation2 [shape = 'u8[4096]{0}', space=vmem, size = 0x1000, scoped, tag = 'input window, operand 0, single buffered']
    #allocation3 [shape = 's32[1]{0}', space=sflag, size = 0x4, scoped, tag = 'scoped memory for tpu_custom_call.1']
    #allocation4 [shape = 's32[1]{0}', space=sflag, size = 0x4, scoped, tag = 'scoped memory for tpu_custom_call.1']
    #allocation5 [shape = 'u8[4096]{0}', space=vmem, size = 0x1000, scoped, tag = 'input window, operand 1, single buffered']
    #allocation6 [shape = 's32[1]{0}', space=sflag, size = 0x4, scoped, tag = 'scoped memory for tpu_custom_call.1']
    #allocation7 [shape = 'u8[32768]{0}', space=vmem, size = 0x8000, scoped, tag = 'input window, operand 2, single buffered']
    #allocation8 [shape = 'u8[4096]{0}', space=vmem, size = 0x1000, scoped, tag = 'output window, operand 0, single buffered']
    %9 = vsyncpa [#allocation3], 0
    %10 = vsyncpa [#allocation6], 0
    %11 = vsyncpa [#allocation4], 0
    // Predicated region
    $region2: #{tpu_custom_call.1} parent=1 // pred_check
      _
    $region3: #{tpu_custom_call.1} parent=1 // pred_check_branch
      %13 = sbr.rel (0) target = $region5
    $region4: #{tpu_custom_call.1} parent=1 // pred_region
      %s15 = ssub.s32 128, 128
      %16 = vsyncadd [#allocation3], %s15
      %s18 = sshll.u32 [#allocation2], 4
      %s19 = int_to_ptr.vmem [resolvable:$true] %s18
      %21 = dma.hbm_to_vmem [thread:$0]  %s0, 128, %s19, [#allocation3]
    $region5: #{tpu_custom_call.1} parent=1 // pred_fallthru
      _
    // Predicated region
    $region6: #{tpu_custom_call.1} parent=1 // pred_check
      _
    $region7: #{tpu_custom_call.1} parent=1 // pred_check_branch
      %23 = sbr.rel (0) target = $region9
    $region8: #{tpu_custom_call.1} parent=1 // pred_region
      %s25 = ssub.s32 128, 128
      %26 = vsyncadd [#allocation6], %s25
      %s28 = sshll.u32 [#allocation5], 4
      %s29 = int_to_ptr.vmem [resolvable:$true] %s28
      %31 = dma.hbm_to_vmem [thread:$0]  %s1, 128, %s29, [#allocation6]
    $region9: #{tpu_custom_call.1} parent=1 // pred_fallthru
      _
    // Predicated region
    $region10: #{tpu_custom_call.1} parent=1 // pred_check
      _
    $region11: #{tpu_custom_call.1} parent=1 // pred_check_branch
      %33 = sbr.rel (0) target = $region13
    $region12: #{tpu_custom_call.1} parent=1 // pred_region
      %s35 = ssub.s32 1024, 1024
      %36 = vsyncadd [#allocation6], %s35
      %s37 = sshll.u32 [#allocation7], 4
      %s38 = int_to_ptr.vmem [resolvable:$true] %s37
      %43 = dma.hbm_to_vmem [thread:$0]  %s2, 1024, %s38, [#allocation6], 128, 128, 8
    $region13: #{tpu_custom_call.1} parent=1 // pred_fallthru
      _
    // Predicated region
    $region14: #{tpu_custom_call.1} parent=1 // pred_check
      _
    $region15: #{tpu_custom_call.1} parent=1 // pred_check_branch
      %45 = sbr.rel (0) target = $region17
    $region16: #{tpu_custom_call.1} parent=1 // pred_region
      _
    $region17: #{tpu_custom_call.1} parent=1 // pred_fallthru
      _
    // Predicated region
    $region18: #{tpu_custom_call.1} parent=1 // pred_check
      _
    $region19: #{tpu_custom_call.1} parent=1 // pred_check_branch
      %47 = sbr.rel (0) target = $region21
    $region20: #{tpu_custom_call.1} parent=1 // pred_region
      %48 = dma.done [#allocation3], 128
    $region21: #{tpu_custom_call.1} parent=1 // pred_fallthru
      _
    // Predicated region
    $region22: #{tpu_custom_call.1} parent=1 // pred_check
      _
    $region23: #{tpu_custom_call.1} parent=1 // pred_check_branch
      %50 = sbr.rel (0) target = $region25
    $region24: #{tpu_custom_call.1} parent=1 // pred_region
      %51 = dma.done [#allocation6], 128
    $region25: #{tpu_custom_call.1} parent=1 // pred_fallthru
      _
    // Predicated region
    $region26: #{tpu_custom_call.1} parent=1 // pred_check
      _
    $region27: #{tpu_custom_call.1} parent=1 // pred_check_branch
      %53 = sbr.rel (0) target = $region29
    $region28: #{tpu_custom_call.1} parent=1 // pred_region
      %54 = dma.done [#allocation6], 1024
    $region29: #{tpu_custom_call.1} parent=1 // pred_fallthru
      _
    %v55 = vld [vmem:[#allocation2] sm:$0xff]
    %v56 = vld [vmem:[#allocation7] sm:$0xff]
    %v57 = vld [vmem:[#allocation7 + $0x8] sm:$0xff]
    %v58 = vld [vmem:[#allocation7 + $0x10] sm:$0xff]
    %v59 = vld [vmem:[#allocation7 + $0x18] sm:$0xff]
    %v60 = vld [vmem:[#allocation7 + $0x20] sm:$0xff]
    %v61 = vld [vmem:[#allocation7 + $0x28] sm:$0xff]
    %v62 = vld [vmem:[#allocation7 + $0x30] sm:$0xff]
    %v63 = vld [vmem:[#allocation7 + $0x38] sm:$0xff]
    %v64 = vld [vmem:[%s3] sm:$0x1]
    %v66 = vlaneseq
    %v67 = vshrl.u32 %v66, 7
    %v68 = vsub.s32 0, %v67
    %v69 = vrot.slane %v64, %v68
    %vm71 = vcmask 523264
    %v73 = vsel %vm71, %v55, 0
    %75 = vmatprep.subr.mxu0 0.0
    %76 = vmatpush1.msra.mxu0 0.0
    %77 = vmatprep.subr.mxu0 0.0
    %78 = vmatpush1.msra.mxu0 0.0
    %79 = vmatprep.subr.mxu0 0.0
    %80 = vmatpush1.msra.mxu0 0.0
    %81 = vmatprep.subr.mxu0 0.0
    %82 = vmatpush1.msra.mxu0 0.0
    %83 = vmatprep.subr.mxu0 0.0
    %84 = vmatpush1.msra.mxu0 0.0
    %85 = vmatprep.subr.mxu0 0.0
    %86 = vmatpush1.msra.mxu0 0.0
    %87 = vmatprep.subr.mxu0 0.0
    %88 = vmatpush1.msra.mxu0 0.0
    %89 = vmatprep.subr.mxu0 0.0
    %90 = vmatpush1.msra.mxu0 0.0
    %91 = vmatprep.subr.mxu0 0.0
    %92 = vmatpush1.msra.mxu0 %v63
    %93 = vmatprep.subr.mxu0 0.0
    %94 = vmatpush1.msra.mxu0 %v62
    %95 = vmatprep.subr.mxu0 0.0
    %96 = vmatpush1.msra.mxu0 %v61
    %97 = vmatprep.subr.mxu0 0.0
    %98 = vmatpush1.msra.mxu0 %v60
    %99 = vmatprep.subr.mxu0 0.0
    %100 = vmatpush1.msra.mxu0 %v59
    %101 = vmatprep.subr.mxu0 0.0
    %102 = vmatpush1.msra.mxu0 %v58
    %103 = vmatprep.subr.mxu0 0.0
    %104 = vmatpush1.msra.mxu0 %v57
    %105 = vmatprep.subr.mxu0 0.0
    %106 = vmatpush1.msra.mxu0 %v56
    %107 = vmatprep.subr.mxu0 0.0
    %108 = vmatpush2.msra.mxu0 0.0
    %109 = vmatprep.subr.mxu0 0.0
    %110 = vmatpush2.msra.mxu0 0.0
    %111 = vmatprep.subr.mxu0 0.0
    %112 = vmatpush2.msra.mxu0 0.0
    %113 = vmatprep.subr.mxu0 0.0
    %114 = vmatpush2.msra.mxu0 0.0
    %115 = vmatprep.subr.mxu0 0.0
    %116 = vmatpush2.msra.mxu0 0.0
    %117 = vmatprep.subr.mxu0 0.0
    %118 = vmatpush2.msra.mxu0 0.0
    %119 = vmatprep.subr.mxu0 0.0
    %120 = vmatpush2.msra.mxu0 0.0
    %121 = vmatprep.subr.mxu0 0.0
    %122 = vmatpush2.msra.mxu0 0.0
    %123 = vmatprep.subr.mxu0 0.0
    %124 = vmatpush2.msra.mxu0 0.0
    %125 = vmatprep.subr.mxu0 0.0
    %126 = vmatpush2.msra.mxu0 0.0
    %127 = vmatprep.subr.mxu0 0.0
    %128 = vmatpush2.msra.mxu0 0.0
    %129 = vmatprep.subr.mxu0 0.0
    %130 = vmatpush2.msra.mxu0 0.0
    %131 = vmatprep.subr.mxu0 0.0
    %132 = vmatpush2.msra.mxu0 0.0
    %133 = vmatprep.subr.mxu0 0.0
    %134 = vmatpush2.msra.mxu0 0.0
    %135 = vmatprep.subr.mxu0 0.0
    %136 = vmatpush2.msra.mxu0 0.0
    %137 = vmatprep.subr.mxu0 0.0
    %138 = vmatpush2.msra.mxu0 0.0
    %139 = vmatprep.mubr.f32.mxu0 0.0
    %140 = vmatmul.mubr.f32.gmra.mxu0 %v73
    %v141 = vpop.f32.mrf.mxu0
    %v142 = vadd.f32 %v69, %v141
    %v143 = vpop.f32.mrf.mxu0
    %144 = vdwg.mxu0
    %v145 = vxor.u32 %v142, 2147483648
    %v146 = vmul.f32 %v145, 1.442695
    %v147 = vpow.pop %v146
    %v148 = vadd.f32 %v147, 1.0
    %v149 = vrcp.pop %v148
    %v150 = vmul.f32 1.0, %v149
    %v151 = vtanh.pop %v142
    %v152 = vld [vmem:[#allocation5] sm:$0xff]
    %154 = vrot.lane.b32.xlu0 %v152, 32
    %v155 = vpop.permute.xlu0 %154
    %v157 = vmul.f32 %v150, %v155
    %159 = vrot.lane.b32.xlu0 %v151, 64
    %v160 = vpop.permute.xlu0 %159
    %v162 = vmul.f32 %v150, %v160
    %164 = vrot.lane.b32.xlu0 %v162, 32
    %v165 = vpop.permute.xlu0 %164
    %v167 = vadd.f32 %v157, %v165
    %v168 = vtanh.pop %v167
    %170 = vrot.lane.b32.xlu0 %v168, 64
    %v171 = vpop.permute.xlu0 %170
    %v173 = vmul.f32 %v150, %v171
    %175 = vrot.lane.b32.xlu0 %v173, 32
    %v176 = vpop.permute.xlu0 %175
    %vm178 = vcmask 261120
    %v179 = vsel %vm178, %v176, %v167
    %180 = vst.msk [vmem:[#allocation8] sm:$0xff] %vm71, %v179
    // Predicated region
    $region30: #{tpu_custom_call.1} parent=1 // pred_check
      _
    $region31: #{tpu_custom_call.1} parent=1 // pred_check_branch
      %182 = sbr.rel (0) target = $region33
    $region32: #{tpu_custom_call.1} parent=1 // pred_region
      %s184 = ssub.s32 128, 128
      %185 = vsyncadd [#allocation4], %s184
      %s187 = sshll.u32 [#allocation8], 4
      %s188 = int_to_ptr.vmem [resolvable:$true] %s187
      %190 = dma.vmem_to_hbm [thread:$0]  %s188, 128, %s4, [#allocation4]
    $region33: #{tpu_custom_call.1} parent=1 // pred_fallthru
      _
    // Predicated region
    $region34: #{tpu_custom_call.1} parent=1 // pred_check
      _
    $region35: #{tpu_custom_call.1} parent=1 // pred_check_branch
      %192 = sbr.rel (0) target = $region37
    $region36: #{tpu_custom_call.1} parent=1 // pred_region
      %193 = dma.done [#allocation4], 128
    $region37: #{tpu_custom_call.1} parent=1 // pred_fallthru
      _
    %194 = vsyncpa [#allocation3], 1
    %195 = vsyncpa [#allocation6], 1
    %196 = vsyncpa [#allocation4], 1

</llo_original>
